<compile_context>
chip_gen: v7x
topology: tpu7x:2x2x1
jax: 0.10.0
libtpu: 0.0.40
codegen_flags: <defaults>
</compile_context>

<pallas_src>
import functools
import math

import jax
import jax.numpy as jnp
from jax import lax
from jax.experimental import pallas as pl
from jax.experimental.pallas import tpu as pltpu


def _seesaw_kernel(n_ref, logits_ref, tgt_ref, tgt_logit_ref, log_acc_t_ref,
                   log_acc_ref, out_ref, *, p, q, log_eps, tile_n,
                   skip_second_max):
    logits = logits_ref[...].astype(jnp.float32)   # (T, C)  (upcast if bf16 stream)
    tgt = tgt_ref[...]                             # (T, 1)  i32
    tgt_logit = tgt_logit_ref[...]                 # (T, 1)  f32  logits[i, t_i]
    log_acc_t = log_acc_t_ref[...]                 # (T, 1)  f32  log acc[t_i]
    log_acc = log_acc_ref[...]                     # (1, C)  f32  log(clamp(acc, 1))

    tn, c = logits.shape
    col = lax.broadcasted_iota(jnp.int32, (tn, c), 1)
    is_tgt = col == tgt                            # bool mask only (no float one-hot)

    # ---- single log-softmax pass (reused for compensation + self score) ----
    m = jnp.max(logits, axis=1, keepdims=True)
    shifted = logits - m
    lse = jnp.log(jnp.sum(jnp.exp(shifted), axis=1, keepdims=True))
    log_scores = shifted - lse                                      # log softmax
    log_self = jnp.maximum(tgt_logit - m - lse, log_eps)            # clamp(s_t, eps)

    # ---- seesaw adjustment entirely in log space (no pow / div / log(w)) ----
    mitigation_log = p * jnp.minimum(log_acc - log_acc_t, 0.0)      # (acc_j/acc_t)^p if <1
    compensation_log = q * jnp.maximum(log_scores - log_self, 0.0)  # (s_j/s_t)^q     if >1
    log_adj = jnp.where(is_tgt, 0.0, mitigation_log + compensation_log)
    new_shifted = shifted + log_adj                                 # == new_logits - m

    # ---- per-row cross entropy on adjusted logits (target column unchanged) --
    if skip_second_max:
        # new_shifted <= q * (-log eps) (~9.2 default): exp stays safe in f32.
        lse2 = m + jnp.log(jnp.sum(jnp.exp(new_shifted), axis=1, keepdims=True))
    else:
        m2 = jnp.max(new_shifted, axis=1, keepdims=True)
        lse2 = m + m2 + jnp.log(
            jnp.sum(jnp.exp(new_shifted - m2), axis=1, keepdims=True))
    per_sample = lse2 - tgt_logit                                   # (T, 1)

    # mask ragged-batch garbage rows; jnp.where so NaN/inf cannot poison the sum
    row = pl.program_id(0) * tile_n + lax.broadcasted_iota(jnp.int32, (tn, 1), 0)
    partial = jnp.sum(jnp.where(row < n_ref[0], per_sample, 0.0))

    # lane-dense (8, 128) writeback of the per-tile partial sum
    out_ref[...] = jnp.full((8, 128), partial, dtype=jnp.float32)


def _round_up(x, m):
    return ((x + m - 1) // m) * m


def _choose_tile_n(n, c, vmem_limit_bytes):
    # 2 double-buffered copies of the streamed logits tile + ~8 live f32
    # (tile_n, C) temporaries (no float one-hot, no padded copy).
    per_row_bytes = (2 + 8) * c * 4
    t = int(vmem_limit_bytes * 0.7) // per_row_bytes
    t = min(t, 1024, max(8, (n // 8) * 8))
    # Engage >= 4 grid steps (2 TensorCores on v7x + pipeline overlap) whenever
    # that still leaves >= 512-row tiles (bandwidth sweet spot on v5e/v6e).
    cap4 = _round_up(pl.cdiv(n, 4), 8)
    if cap4 >= 512:
        t = min(t, cap4)
    # TODO(synk): for very wide classifiers (C large enough that t collapses
    # toward 8, esp. on v7x's 64 MiB VMEM) a class-dim grid axis with an online
    # logsumexp would be needed; not implemented here.
    return max(8, (t // 8) * 8)


def seesaw_loss(outputs, targets, accumulated, *, p=0.8, q=2.0, eps=0.01,
                tile_n=None, logits_stream_dtype=None):
    """Functional SeesawLoss forward.

    Args:
      outputs:             (N, C) float logits.
      targets:             (N,)   int class ids.
      accumulated:         (C,)   float running per-class counts (module buffer).
      tile_n:              optional override of the batch tile size (testing).
      logits_stream_dtype: optional narrower dtype (e.g. jnp.bfloat16) for the
                           HBM->VMEM logits stream on HBM-bound generations
                           (accuracy-dependent; default keeps f32).

    Returns:
      (scalar loss, updated accumulated counts)
    """
    n, c = outputs.shape

    # Buffer update (== the per-unique loop in the PyTorch module), functional.
    # TODO(synk): the stateful register_buffer update is returned, not in-place.
    new_acc = accumulated + jnp.zeros_like(accumulated).at[targets].add(1.0)
    log_acc = jnp.log(jnp.maximum(new_acc, 1.0)).astype(jnp.float32)

    outputs_f = outputs.astype(jnp.float32)
    tgt_i = targets.astype(jnp.int32)

    # Tiny per-row gathers done once in the wrapper (N floats each) instead of
    # three (tile_n, C) one-hot reductions per tile inside the kernel.
    tgt_logit = jnp.take_along_axis(outputs_f, tgt_i[:, None], axis=1)   # (N, 1)
    log_acc_t = jnp.take(log_acc, tgt_i)[:, None]                        # (N, 1)

    # Optional narrow dtype for the dominant input stream (upcast in-kernel).
    stream_dtype = (jnp.dtype(jnp.float32) if logits_stream_dtype is None
                    else jnp.dtype(logits_stream_dtype))
    logits_stream = outputs_f.astype(stream_dtype)
    sublane = max(8, (4 // stream_dtype.itemsize) * 8)   # 8 f32 / 16 bf16

    # ---- tiling geometry (generation-aware VMEM budget) ----
    try:
        vmem_cap = int(pltpu.get_tpu_info().vmem_capacity_bytes)
    except Exception:  # conservative fallback (v7x-sized VMEM)
        vmem_cap = 64 * 1024 * 1024
    vmem_limit = min(vmem_cap // 2, 64 * 1024 * 1024)

    if tile_n is None:
        tile_n = _choose_tile_n(n, c, vmem_limit)
    tile_n = max(sublane, (int(tile_n) // sublane) * sublane)
    num_tiles = pl.cdiv(n, tile_n)

    kernel = functools.partial(
        _seesaw_kernel, p=float(p), q=float(q), log_eps=float(math.log(eps)),
        tile_n=tile_n,
        skip_second_max=(float(q) * max(0.0, -math.log(eps)) <= 40.0))

    grid_spec = pltpu.PrefetchScalarGridSpec(
        num_scalar_prefetch=1,                               # n_valid in SMEM
        grid=(num_tiles,),
        in_specs=[
            pl.BlockSpec((tile_n, c), lambda i, n_sm: (i, 0)),   # logits (no pad copy)
            pl.BlockSpec((tile_n, 1), lambda i, n_sm: (i, 0)),   # targets
            pl.BlockSpec((tile_n, 1), lambda i, n_sm: (i, 0)),   # logits[i, t_i]
            pl.BlockSpec((tile_n, 1), lambda i, n_sm: (i, 0)),   # log acc[t_i]
            pl.BlockSpec((1, c), lambda i, n_sm: (0, 0)),        # log acc (grid-invariant)
        ],
        out_specs=pl.BlockSpec((8, 128), lambda i, n_sm: (i, 0)),
    )

    out = pl.pallas_call(
        kernel,
        grid_spec=grid_spec,
        out_shape=jax.ShapeDtypeStruct((num_tiles * 8, 128), jnp.float32),
        compiler_params=pltpu.CompilerParams(
            dimension_semantics=("parallel",),
            vmem_limit_bytes=int(vmem_limit),
        ),
    )(jnp.array([n], dtype=jnp.int32), logits_stream, tgt_i[:, None],
      tgt_logit, log_acc_t, log_acc[None, :])

    partials = out.reshape(num_tiles, 8, 128)[:, 0, 0]
    loss = jnp.sum(partials) / jnp.float32(n)
    return loss, new_acc


def _reference(outputs, targets, accumulated, p=0.8, q=2.0, eps=0.01):
    n, c = outputs.shape
    new_acc = accumulated + jnp.zeros_like(accumulated).at[targets].add(1.0)
    acc = jnp.maximum(new_acc, 1.0)
    onehot = jax.nn.one_hot(targets, c, dtype=jnp.float32)
    matrix = acc[None, :] / acc[:, None]
    sw = jnp.where(matrix < 1.0, matrix ** p, 1.0)
    mitigation = sw[targets, :]
    scores = jax.nn.softmax(outputs, axis=1)
    self_sc = jnp.maximum(scores[jnp.arange(n), targets], eps)
    sm = scores / self_sc[:, None]
    comp = jnp.where(sm > 1.0, sm ** q, 1.0)
    w = mitigation * comp
    new_logits = outputs + jnp.log(w) * (1.0 - onehot)
    logp = jax.nn.log_softmax(new_logits, axis=1)
    return -jnp.mean(logp[jnp.arange(n), targets]), new_acc


if __name__ == "__main__":
    N, C = 50, 200  # small synthetic shapes; ragged C (not /128) + ragged batch tail

    key = jax.random.PRNGKey(0)
    k1, k2, k3 = jax.random.split(key, 3)
    outputs = jax.random.normal(k1, (N, C), dtype=jnp.float32)
    targets = jax.random.randint(k2, (N,), 0, C, dtype=jnp.int32)
    accumulated = jax.random.randint(k3, (C,), 0, 10).astype(jnp.float32)

    ref_loss, ref_acc = _reference(outputs, targets, accumulated)

    # default path (auto tile size, ragged last block masked in-kernel)
    loss, new_acc = seesaw_loss(outputs, targets, accumulated)
    loss = jax.block_until_ready(loss)
    assert jnp.allclose(loss, ref_loss, rtol=1e-3, atol=1e-3), (loss, ref_loss)
    assert jnp.allclose(new_acc, ref_acc)

    # multi-tile path (forced small batch tile, 4 grid steps)
    loss_t, _ = seesaw_loss(outputs, targets, accumulated, tile_n=16)
    loss_t = jax.block_until_ready(loss_t)
    assert jnp.allclose(loss_t, ref_loss, rtol=1e-3, atol=1e-3), (loss_t, ref_loss)

    print("KERNEL_OK")
</pallas_src>

<mosaic_0001>
module attributes {stable_mosaic.version = 11 : i64} {
  func.func @_seesaw_kernel(%arg0: i32, %arg1: memref<1xi32, #tpu.memory_space<smem>>, %arg2: memref<48x200xf32, #tpu.memory_space<vmem>>, %arg3: memref<48x1xi32, #tpu.memory_space<vmem>>, %arg4: memref<48x1xf32, #tpu.memory_space<vmem>>, %arg5: memref<48x1xf32, #tpu.memory_space<vmem>>, %arg6: memref<1x200xf32, #tpu.memory_space<vmem>>, %arg7: memref<8x128xf32, #tpu.memory_space<vmem>>) attributes {dimension_semantics = [#tpu.dimension_semantics<parallel>], iteration_bounds = array<i64: 2>, scalar_prefetch = 1 : i64, scratch_operands = 0 : i64, tpu.core_type = #tpu.core_type<tc>, window_params = [{transform_indices = @transform_0, window_bounds = array<i64: 48, 200>}, {transform_indices = @transform_1, window_bounds = array<i64: 48, 1>}, {transform_indices = @transform_2, window_bounds = array<i64: 48, 1>}, {transform_indices = @transform_3, window_bounds = array<i64: 48, 1>}, {pipeline_mode = #tpu.pipeline_mode<synchronous>, transform_indices = @transform_4, window_bounds = array<i64: 1, 200>}, {transform_indices = @transform_5, window_bounds = array<i64: 8, 128>}]} {
    %c0 = arith.constant 0 : index
    %c0_0 = arith.constant 0 : index
    %0 = vector.load %arg2[%c0, %c0_0] : memref<48x200xf32, #tpu.memory_space<vmem>>, vector<48x200xf32>
    %c0_1 = arith.constant 0 : index
    %c0_2 = arith.constant 0 : index
    %1 = vector.load %arg3[%c0_1, %c0_2] : memref<48x1xi32, #tpu.memory_space<vmem>>, vector<48x1xi32>
    %c0_3 = arith.constant 0 : index
    %c0_4 = arith.constant 0 : index
    %2 = vector.load %arg4[%c0_3, %c0_4] : memref<48x1xf32, #tpu.memory_space<vmem>>, vector<48x1xf32>
    %c0_5 = arith.constant 0 : index
    %c0_6 = arith.constant 0 : index
    %3 = vector.load %arg5[%c0_5, %c0_6] : memref<48x1xf32, #tpu.memory_space<vmem>>, vector<48x1xf32>
    %c0_7 = arith.constant 0 : index
    %c0_8 = arith.constant 0 : index
    %4 = vector.load %arg6[%c0_7, %c0_8] : memref<1x200xf32, #tpu.memory_space<vmem>>, vector<1x200xf32>
    %5 = tpu.iota {dimensions = array<i32: 1>} : vector<48x200xi32>
    %6 = vector.broadcast %1 : vector<48x1xi32> to vector<48x200xi32>
    %7 = arith.cmpi eq, %5, %6 : vector<48x200xi32>
    %cst = arith.constant dense<0xFF800000> : vector<48xf32>
    %8 = vector.multi_reduction <maximumf>, %0, %cst [1] : vector<48x200xf32> to vector<48xf32>
    %9 = vector.shape_cast %8 : vector<48xf32> to vector<48x1xf32>
    %10 = vector.broadcast %9 : vector<48x1xf32> to vector<48x200xf32>
    %11 = arith.subf %0, %10 : vector<48x200xf32>
    %12 = math.exp %11 : vector<48x200xf32>
    %cst_9 = arith.constant dense<0.000000e+00> : vector<48xf32>
    %13 = vector.multi_reduction <add>, %12, %cst_9 [1] : vector<48x200xf32> to vector<48xf32>
    %14 = vector.shape_cast %13 : vector<48xf32> to vector<48x1xf32>
    %15 = math.log %14 : vector<48x1xf32>
    %16 = vector.broadcast %15 : vector<48x1xf32> to vector<48x200xf32>
    %17 = arith.subf %11, %16 : vector<48x200xf32>
    %18 = arith.subf %2, %9 : vector<48x1xf32>
    %19 = arith.subf %18, %15 : vector<48x1xf32>
    %cst_10 = arith.constant -4.60517025 : f32
    %20 = vector.broadcast %cst_10 : f32 to vector<48x1xf32>
    %21 = arith.maximumf %19, %20 : vector<48x1xf32>
    %22 = vector.broadcast %4 : vector<1x200xf32> to vector<48x200xf32>
    %23 = vector.broadcast %3 : vector<48x1xf32> to vector<48x200xf32>
    %24 = arith.subf %22, %23 : vector<48x200xf32>
    %cst_11 = arith.constant 0.000000e+00 : f32
    %25 = vector.broadcast %cst_11 : f32 to vector<48x200xf32>
    %26 = arith.minimumf %24, %25 : vector<48x200xf32>
    %cst_12 = arith.constant 8.000000e-01 : f32
    %27 = vector.broadcast %cst_12 : f32 to vector<48x200xf32>
    %28 = arith.mulf %27, %26 : vector<48x200xf32>
    %29 = vector.broadcast %21 : vector<48x1xf32> to vector<48x200xf32>
    %30 = arith.subf %17, %29 : vector<48x200xf32>
    %cst_13 = arith.constant 0.000000e+00 : f32
    %31 = vector.broadcast %cst_13 : f32 to vector<48x200xf32>
    %32 = arith.maximumf %30, %31 : vector<48x200xf32>
    %cst_14 = arith.constant 2.000000e+00 : f32
    %33 = vector.broadcast %cst_14 : f32 to vector<48x200xf32>
    %34 = arith.mulf %33, %32 : vector<48x200xf32>
    %35 = arith.addf %28, %34 : vector<48x200xf32>
    %cst_15 = arith.constant 0.000000e+00 : f32
    %36 = vector.broadcast %cst_15 : f32 to vector<48x200xf32>
    %37 = arith.select %7, %36, %35 : vector<48x200xi1>, vector<48x200xf32>
    %38 = arith.addf %11, %37 : vector<48x200xf32>
    %39 = math.exp %38 : vector<48x200xf32>
    %cst_16 = arith.constant dense<0.000000e+00> : vector<48xf32>
    %40 = vector.multi_reduction <add>, %39, %cst_16 [1] : vector<48x200xf32> to vector<48xf32>
    %41 = vector.shape_cast %40 : vector<48xf32> to vector<48x1xf32>
    %42 = math.log %41 : vector<48x1xf32>
    %43 = arith.addf %9, %42 : vector<48x1xf32>
    %44 = arith.subf %43, %2 : vector<48x1xf32>
    %c48_i32 = arith.constant 48 : i32
    %45 = arith.muli %arg0, %c48_i32 : i32
    %46 = tpu.iota {dimensions = array<i32: 0>} : vector<48x1xi32>
    %47 = vector.broadcast %45 : i32 to vector<48x1xi32>
    %48 = arith.addi %47, %46 : vector<48x1xi32>
    %c0_17 = arith.constant 0 : index
    %49 = memref.load %arg1[%c0_17] : memref<1xi32, #tpu.memory_space<smem>>
    %50 = vector.broadcast %49 : i32 to vector<48x1xi32>
    %51 = arith.cmpi slt, %48, %50 : vector<48x1xi32>
    %cst_18 = arith.constant 0.000000e+00 : f32
    %52 = vector.broadcast %cst_18 : f32 to vector<48x1xf32>
    %53 = arith.select %51, %44, %52 : vector<48x1xi1>, vector<48x1xf32>
    %54 = vector.shape_cast %53 : vector<48x1xf32> to vector<1x48x1xf32>
    %cst_19 = arith.constant dense<0.000000e+00> : vector<1xf32>
    %55 = vector.multi_reduction <add>, %54, %cst_19 [1, 2] : vector<1x48x1xf32> to vector<1xf32>
    %56 = vector.shape_cast %55 : vector<1xf32> to vector<1x1x1xf32>
    %57 = vector.extract %56[0, 0, 0] : f32 from vector<1x1x1xf32>
    %58 = vector.broadcast %57 : f32 to vector<8x128xf32>
    %c0_20 = arith.constant 0 : index
    %c0_21 = arith.constant 0 : index
    %59 = vector.load %arg7[%c0_20, %c0_21] : memref<8x128xf32, #tpu.memory_space<vmem>>, vector<8x128xf32>
    tpu.vector_store %arg7[%c0_20, %c0_21], %58 {strides = array<i32>} : memref<8x128xf32, #tpu.memory_space<vmem>>, vector<8x128xf32>,
    return
  }
  func.func @transform_0(%arg0: i32, %arg1: memref<1xi32, #tpu.memory_space<smem>>) -> (i32, i32) {
    %c0_i32 = arith.constant 0 : i32
    %c0_i32_0 = arith.constant 0 : i32
    return %arg0, %c0_i32 : i32, i32
  }
  func.func @transform_1(%arg0: i32, %arg1: memref<1xi32, #tpu.memory_space<smem>>) -> (i32, i32) {
    %c0_i32 = arith.constant 0 : i32
    %c0_i32_0 = arith.constant 0 : i32
    return %arg0, %c0_i32 : i32, i32
  }
  func.func @transform_2(%arg0: i32, %arg1: memref<1xi32, #tpu.memory_space<smem>>) -> (i32, i32) {
    %c0_i32 = arith.constant 0 : i32
    %c0_i32_0 = arith.constant 0 : i32
    return %arg0, %c0_i32 : i32, i32
  }
  func.func @transform_3(%arg0: i32, %arg1: memref<1xi32, #tpu.memory_space<smem>>) -> (i32, i32) {
    %c0_i32 = arith.constant 0 : i32
    %c0_i32_0 = arith.constant 0 : i32
    return %arg0, %c0_i32 : i32, i32
  }
  func.func @transform_4(%arg0: i32, %arg1: memref<1xi32, #tpu.memory_space<smem>>) -> (i32, i32) {
    %c0_i32 = arith.constant 0 : i32
    %c0_i32_0 = arith.constant 0 : i32
    %c0_i32_1 = arith.constant 0 : i32
    return %c0_i32, %c0_i32_0 : i32, i32
  }
  func.func @transform_5(%arg0: i32, %arg1: memref<1xi32, #tpu.memory_space<smem>>) -> (i32, i32) {
    %c0_i32 = arith.constant 0 : i32
    %c0_i32_0 = arith.constant 0 : i32
    return %arg0, %c0_i32 : i32, i32
  }
}

</mosaic_0001>

<llo_original>
// kernel: tpu_custom_call.1
$region0: #{tpu_custom_call.1}
  #allocation0 [shape = 'u32[]', space=smem, size = 0x4, offset = 0x4, fixed_abs, tag = 'smem constant byte address 0x4 - core index']
  #allocation1 [shape = 'u32[144,128]{1,0:T(1,128)}', space=vmem, size = 0x12000, scoped, tag = 'internal scratch']
  #allocation2 [shape = 's32[1]{0}', space=sflag, size = 0x4, scoped, tag = 'scoped memory for tpu_custom_call.1']
  #allocation3 [shape = 's32[1]{0:T(128)S(6)}', space=smem, size = 0x200, scoped, tag = 'prefetched SMEM operand 0']
  %s0 = inlined_call_operand.<no memory space> [shape: s32[1], index: 0, kind: input, shape index: {}]
  %s1 = inlined_call_operand.vmem [shape: f32[50,200], index: 1, kind: input, shape index: {}]
  %s2 = inlined_call_operand.vmem [shape: s32[50,1], index: 2, kind: input, shape index: {}]
  %s3 = inlined_call_operand.vmem [shape: f32[50,1], index: 3, kind: input, shape index: {}]
  %s4 = inlined_call_operand.vmem [shape: f32[50,1], index: 4, kind: input, shape index: {}]
  %s5 = inlined_call_operand.vmem [shape: f32[1,200], index: 5, kind: input, shape index: {}]
  %s6 = inlined_call_operand.hbm [shape: f32[16,128], index: 6, kind: output, shape index: {}]
  %s7 = sld [smem:[#allocation0]]
  $region53: #{tpu_custom_call.1} parent=0
    _
  %s9 = ssub.s32 1, %s7
  %s10 = scalar_select 0, %s9, %s7
  %11 = sst [smem:[#allocation3]] %s0
  $region1: #{tpu_custom_call.1} parent=0
    #allocation4 [shape = 'u8[8192]{0}', space=vmem, size = 0x2000, scoped, tag = 'output window, operand 0']
    #allocation5 [shape = 's32[2]{0}', space=sflag, size = 0x8, scoped, tag = 'scoped memory for tpu_custom_call.1']
    %12 = vsyncpa [#allocation5], 0
    %s13 = scalar_lea.sflag [#allocation5], 1
    %14 = vsyncpa %s13, 0
    loop: start=0, step=1, limit=4
    $region2: #{tpu_custom_call.1} parent=1 // loop_pre_header
      _
    $region3: #{tpu_custom_call.1} parent=1 // loop_header
      %s16 = sphi 0, %s20
      %p17 = scmp.ge.s32.totalorder %s16, 4
      %s26 = sphi 0, %s28
      %s29 = sphi 0, %s26
      %s30 = sphi 0, %s29
      %s46 = sphi 0, %s30
      %s52 = sphi 0, %s54
      %s55 = sphi 0, %s52
      %s56 = sphi 0, %s55
      %s72 = sphi 0, %s56
      %s78 = sphi 0, %s80
      %s81 = sphi 0, %s78
      %s82 = sphi 0, %s81
      %s98 = sphi 0, %s82
      %s104 = sphi 0, %s106
      %s107 = sphi 0, %s104
      %s108 = sphi 0, %s107
      %s124 = sphi 0, %s108
      %s128 = sphi 0, %s128
      %s130 = sphi 0, %s128
      %s131 = sphi 0, %s130
      %s145 = sphi 0, %s131
      %s151 = sphi 0, %s153
      %s154 = sphi 0, %s151
      %s155 = sphi 0, %s154
      %s171 = sphi 0, %s155
    $region4: #{tpu_custom_call.1} parent=1 // loop_header_branch
      %19 = sbr.rel (%p17) target = $region8
    $region5: #{tpu_custom_call.1} parent=1 // loop_body
      %s21 = ssub.s32 %s16, 1
      %s22 = ssub.s32 %s16, 2
      %s23 = sadd.s32 %s16, 1
      %s24 = ssub.s32 %s16, %s23
      %p25 = scmp.eq.s32.totalorder %s24, 0
      %s27 = sadd.s32 %s26, 1
      %s28 = scalar_select %p25, %s26, %s27
      %p31 = pneg %p25
      %p32 = scmp.eq.s32.totalorder %s16, 1
      %p33 = por %p31, %p32
      %p34 = scmp.ne.s32.totalorder %s26, %s29
      %p35 = scmp.eq.s32.totalorder %s16, 0
      %p36 = por %p34, %p35
      %p37 = scmp.ne.s32.totalorder %s26, %s29
      %p38 = scmp.eq.s32.totalorder %s21, 1
      %p39 = por %p37, %p38
      %p40 = scmp.ne.s32.totalorder %s29, %s30
      %p41 = scmp.eq.s32.totalorder %s21, 0
      %p42 = por %p40, %p41
      %p43 = scmp.ne.s32.totalorder %s29, %s30
      %p44 = scmp.eq.s32.totalorder %s22, 1
      %p45 = por %p43, %p44
      %p47 = scmp.ne.s32.totalorder %s30, %s46
      %p48 = scmp.eq.s32.totalorder %s22, 0
      %p49 = por %p47, %p48
      %s50 = ssub.s32 %s16, %s23
      %p51 = scmp.eq.s32.totalorder %s50, 0
      %s53 = sadd.s32 %s52, 1
      %s54 = scalar_select %p51, %s52, %s53
      %p57 = pneg %p51
      %p58 = scmp.eq.s32.totalorder %s16, 1
      %p59 = por %p57, %p58
      %p60 = scmp.ne.s32.totalorder %s52, %s55
      %p61 = scmp.eq.s32.totalorder %s16, 0
      %p62 = por %p60, %p61
      %p63 = scmp.ne.s32.totalorder %s52, %s55
      %p64 = scmp.eq.s32.totalorder %s21, 1
      %p65 = por %p63, %p64
      %p66 = scmp.ne.s32.totalorder %s55, %s56
      %p67 = scmp.eq.s32.totalorder %s21, 0
      %p68 = por %p66, %p67
      %p69 = scmp.ne.s32.totalorder %s55, %s56
      %p70 = scmp.eq.s32.totalorder %s22, 1
      %p71 = por %p69, %p70
      %p73 = scmp.ne.s32.totalorder %s56, %s72
      %p74 = scmp.eq.s32.totalorder %s22, 0
      %p75 = por %p73, %p74
      %s76 = ssub.s32 %s16, %s23
      %p77 = scmp.eq.s32.totalorder %s76, 0
      %s79 = sadd.s32 %s78, 1
      %s80 = scalar_select %p77, %s78, %s79
      %p83 = pneg %p77
      %p84 = scmp.eq.s32.totalorder %s16, 1
      %p85 = por %p83, %p84
      %p86 = scmp.ne.s32.totalorder %s78, %s81
      %p87 = scmp.eq.s32.totalorder %s16, 0
      %p88 = por %p86, %p87
      %p89 = scmp.ne.s32.totalorder %s78, %s81
      %p90 = scmp.eq.s32.totalorder %s21, 1
      %p91 = por %p89, %p90
      %p92 = scmp.ne.s32.totalorder %s81, %s82
      %p93 = scmp.eq.s32.totalorder %s21, 0
      %p94 = por %p92, %p93
      %p95 = scmp.ne.s32.totalorder %s81, %s82
      %p96 = scmp.eq.s32.totalorder %s22, 1
      %p97 = por %p95, %p96
      %p99 = scmp.ne.s32.totalorder %s82, %s98
      %p100 = scmp.eq.s32.totalorder %s22, 0
      %p101 = por %p99, %p100
      %s102 = ssub.s32 %s16, %s23
      %p103 = scmp.eq.s32.totalorder %s102, 0
      %s105 = sadd.s32 %s104, 1
      %s106 = scalar_select %p103, %s104, %s105
      %p109 = pneg %p103
      %p110 = scmp.eq.s32.totalorder %s16, 1
      %p111 = por %p109, %p110
      %p112 = scmp.ne.s32.totalorder %s104, %s107
      %p113 = scmp.eq.s32.totalorder %s16, 0
      %p114 = por %p112, %p113
      %p115 = scmp.ne.s32.totalorder %s104, %s107
      %p116 = scmp.eq.s32.totalorder %s21, 1
      %p117 = por %p115, %p116
      %p118 = scmp.ne.s32.totalorder %s107, %s108
      %p119 = scmp.eq.s32.totalorder %s21, 0
      %p120 = por %p118, %p119
      %p121 = scmp.ne.s32.totalorder %s107, %s108
      %p122 = scmp.eq.s32.totalorder %s22, 1
      %p123 = por %p121, %p122
      %p125 = scmp.ne.s32.totalorder %s108, %s124
      %p126 = scmp.eq.s32.totalorder %s22, 0
      %p127 = por %p125, %p126
      %s129 = sadd.s32 %s128, 1
      %p132 = scmp.eq.s32.totalorder %s16, 1
      %p133 = scmp.ne.s32.totalorder %s128, %s130
      %p134 = scmp.eq.s32.totalorder %s16, 0
      %p135 = por %p133, %p134
      %p136 = scmp.ne.s32.totalorder %s128, %s130
      %p137 = scmp.eq.s32.totalorder %s21, 1
      %p138 = por %p136, %p137
      %p139 = scmp.ne.s32.totalorder %s130, %s131
      %p140 = scmp.eq.s32.totalorder %s21, 0
      %p141 = por %p139, %p140
      %p142 = scmp.ne.s32.totalorder %s130, %s131
      %p143 = scmp.eq.s32.totalorder %s22, 1
      %p144 = por %p142, %p143
      %p146 = scmp.ne.s32.totalorder %s131, %s145
      %p147 = scmp.eq.s32.totalorder %s22, 0
      %p148 = por %p146, %p147
      %s149 = ssub.s32 %s16, %s23
      %p150 = scmp.eq.s32.totalorder %s149, 0
      %s152 = sadd.s32 %s151, 1
      %s153 = scalar_select %p150, %s151, %s152
      %p156 = pneg %p150
      %p157 = scmp.eq.s32.totalorder %s16, 1
      %p158 = por %p156, %p157
      %p159 = scmp.ne.s32.totalorder %s151, %s154
      %p160 = scmp.eq.s32.totalorder %s16, 0
      %p161 = por %p159, %p160
      %p162 = scmp.ne.s32.totalorder %s151, %s154
      %p163 = scmp.eq.s32.totalorder %s21, 1
      %p164 = por %p162, %p163
      %p165 = scmp.ne.s32.totalorder %s154, %s155
      %p166 = scmp.eq.s32.totalorder %s21, 0
      %p167 = por %p165, %p166
      %p168 = scmp.ne.s32.totalorder %s154, %s155
      %p169 = scmp.eq.s32.totalorder %s22, 1
      %p170 = por %p168, %p169
      %p172 = scmp.ne.s32.totalorder %s155, %s171
      %p173 = scmp.eq.s32.totalorder %s22, 0
      %p174 = por %p172, %p173
      %p175 = scmp.le.s32.totalorder 1, %s16
      %p176 = scmp.lt.s32.totalorder %s16, 3
      %p177 = pnand %p175, %p176
      %p178 = pneg %p177
      // Predicated region
      $region9: #{tpu_custom_call.1} parent=5 // pred_check
        _
      $region10: #{tpu_custom_call.1} parent=5 // pred_check_branch
        %180 = sbr.rel (%p177) target = $region12
      $region11: #{tpu_custom_call.1} parent=5 // pred_region
        %s181 = ssub.s32 %s16, 1
        // Predicated region
        $region13: #{tpu_custom_call.1} parent=11 // pred_check
          %p182 = pneg %p141
        $region14: #{tpu_custom_call.1} parent=11 // pred_check_branch
          %184 = sbr.rel (%p182) target = $region16
        $region15: #{tpu_custom_call.1} parent=11 // pred_region
          _
        $region16: #{tpu_custom_call.1} parent=11 // pred_fallthru
          _
      $region12: #{tpu_custom_call.1} parent=5 // pred_fallthru
        _
      %p185 = scmp.lt.s32.totalorder %s16, 2
      // Predicated region
      $region17: #{tpu_custom_call.1} parent=5 // pred_check
        %p186 = pneg %p185
      $region18: #{tpu_custom_call.1} parent=5 // pred_check_branch
        %188 = sbr.rel (%p186) target = $region20
      $region19: #{tpu_custom_call.1} parent=5 // pred_region
        // Predicated region
        $region21: #{tpu_custom_call.1} parent=19 // pred_check
          %p189 = pneg %p36
        $region22: #{tpu_custom_call.1} parent=19 // pred_check_branch
          %191 = sbr.rel (%p189) target = $region24
        $region23: #{tpu_custom_call.1} parent=19 // pred_region
          %s192 = smul.u32 6, %s16
          %s193 = ssub.s32 7, %s192
          %p194 = scmp.lt.s32.totalorder %s193, 6
          %s195 = scalar_select %p194, %s193, 6
          %s196 = smul.u32 128, %s195
          %s197 = smul.u32 %s196, 2
          %p198 = scmp.lt.s32.totalorder %s192, 6
          %s199 = scalar_select %p198, %s192, 6
          %s200 = smul.addr %s199, 2
          %s201 = smul.addr %s200, 8
          %s202 = scalar_lea.vmem %s1, %s201
          %s203 = smul.u32 6, %s16
          %s204 = ssub.s32 7, %s203
          %p205 = scmp.lt.s32.totalorder %s204, 6
          %s206 = scalar_select %p205, %s204, 6
          %s207 = smul.u32 128, %s206
          %s208 = smul.u32 %s207, 2
        $region24: #{tpu_custom_call.1} parent=19 // pred_fallthru
          _
        // Predicated region
        $region25: #{tpu_custom_call.1} parent=19 // pred_check
          %p209 = pneg %p62
        $region26: #{tpu_custom_call.1} parent=19 // pred_check_branch
          %211 = sbr.rel (%p209) target = $region28
        $region27: #{tpu_custom_call.1} parent=19 // pred_region
          %s212 = smul.u32 6, %s16
          %s213 = ssub.s32 7, %s212
          %p214 = scmp.lt.s32.totalorder %s213, 6
          %s215 = scalar_select %p214, %s213, 6
          %s216 = smul.u32 128, %s215
          %p217 = scmp.lt.s32.totalorder %s212, 6
          %s218 = scalar_select %p217, %s212, 6
          %s219 = smul.addr %s218, 8
          %s220 = scalar_lea.vmem %s2, %s219
          %s221 = smul.u32 6, %s16
          %s222 = ssub.s32 7, %s221
          %p223 = scmp.lt.s32.totalorder %s222, 6
          %s224 = scalar_select %p223, %s222, 6
          %s225 = smul.u32 128, %s224
        $region28: #{tpu_custom_call.1} parent=19 // pred_fallthru
          _
        // Predicated region
        $region29: #{tpu_custom_call.1} parent=19 // pred_check
          %p226 = pneg %p88
        $region30: #{tpu_custom_call.1} parent=19 // pred_check_branch
          %228 = sbr.rel (%p226) target = $region32
        $region31: #{tpu_custom_call.1} parent=19 // pred_region
          %s229 = smul.u32 6, %s16
          %s230 = ssub.s32 7, %s229
          %p231 = scmp.lt.s32.totalorder %s230, 6
          %s232 = scalar_select %p231, %s230, 6
          %s233 = smul.u32 128, %s232
          %p234 = scmp.lt.s32.totalorder %s229, 6
          %s235 = scalar_select %p234, %s229, 6
          %s236 = smul.addr %s235, 8
          %s237 = scalar_lea.vmem %s3, %s236
          %s238 = smul.u32 6, %s16
          %s239 = ssub.s32 7, %s238
          %p240 = scmp.lt.s32.totalorder %s239, 6
          %s241 = scalar_select %p240, %s239, 6
          %s242 = smul.u32 128, %s241
        $region32: #{tpu_custom_call.1} parent=19 // pred_fallthru
          _
        // Predicated region
        $region33: #{tpu_custom_call.1} parent=19 // pred_check
          %p243 = pneg %p114
        $region34: #{tpu_custom_call.1} parent=19 // pred_check_branch
          %245 = sbr.rel (%p243) target = $region36
        $region35: #{tpu_custom_call.1} parent=19 // pred_region
          %s246 = smul.u32 6, %s16
          %s247 = ssub.s32 7, %s246
          %p248 = scmp.lt.s32.totalorder %s247, 6
          %s249 = scalar_select %p248, %s247, 6
          %s250 = smul.u32 128, %s249
          %p251 = scmp.lt.s32.totalorder %s246, 6
          %s252 = scalar_select %p251, %s246, 6
          %s253 = smul.addr %s252, 8
          %s254 = scalar_lea.vmem %s4, %s253
          %s255 = smul.u32 6, %s16
          %s256 = ssub.s32 7, %s255
          %p257 = scmp.lt.s32.totalorder %s256, 6
          %s258 = scalar_select %p257, %s256, 6
          %s259 = smul.u32 128, %s258
        $region36: #{tpu_custom_call.1} parent=19 // pred_fallthru
          _
      $region20: #{tpu_custom_call.1} parent=5 // pred_fallthru
        _
      %p260 = scmp.le.s32.totalorder 1, %s16
      %p261 = scmp.lt.s32.totalorder %s16, 3
      %p262 = pnand %p260, %p261
      %p263 = pneg %p262
      // Predicated region
      $region37: #{tpu_custom_call.1} parent=5 // pred_check
        _
      $region38: #{tpu_custom_call.1} parent=5 // pred_check_branch
        %265 = sbr.rel (%p262) target = $region40
      $region39: #{tpu_custom_call.1} parent=5 // pred_region
        %s266 = ssub.s32 %s16, 1
        %s267 = smul.u32 6, %s21
        %s268 = ssub.s32 7, %s267
        %p269 = scmp.lt.s32.totalorder %s268, 6
        %s270 = scalar_select %p269, %s268, 6
        %s271 = smul.u32 128, %s270
        %s272 = smul.u32 %s271, 2
        %p273 = scmp.lt.s32.totalorder %s267, 6
        %s274 = scalar_select %p273, %s267, 6
        %s275 = smul.addr %s274, 2
        %s276 = smul.addr %s275, 8
        %s277 = scalar_lea.vmem %s1, %s276
        %p278 = pneg %p42
        %p279 = pneg %p39
        %s280 = smul.u32 6, %s21
        %s281 = ssub.s32 7, %s280
        %p282 = scmp.lt.s32.totalorder %s281, 6
        %s283 = scalar_select %p282, %s281, 6
        %s284 = smul.u32 128, %s283
        %p285 = scmp.lt.s32.totalorder %s280, 6
        %s286 = scalar_select %p285, %s280, 6
        %s287 = smul.addr %s286, 8
        %s288 = scalar_lea.vmem %s2, %s287
        %p289 = pneg %p68
        %p290 = pneg %p65
        %s291 = smul.u32 6, %s21
        %s292 = ssub.s32 7, %s291
        %p293 = scmp.lt.s32.totalorder %s292, 6
        %s294 = scalar_select %p293, %s292, 6
        %s295 = smul.u32 128, %s294
        %p296 = scmp.lt.s32.totalorder %s291, 6
        %s297 = scalar_select %p296, %s291, 6
        %s298 = smul.addr %s297, 8
        %s299 = scalar_lea.vmem %s3, %s298
        %p300 = pneg %p94
        %p301 = pneg %p91
        %s302 = smul.u32 6, %s21
        %s303 = ssub.s32 7, %s302
        %p304 = scmp.lt.s32.totalorder %s303, 6
        %s305 = scalar_select %p304, %s303, 6
        %s306 = smul.u32 128, %s305
        %p307 = scmp.lt.s32.totalorder %s302, 6
        %s308 = scalar_select %p307, %s302, 6
        %s309 = smul.addr %s308, 8
        %s310 = scalar_lea.vmem %s4, %s309
        %p311 = pneg %p120
        %p312 = pneg %p117
        %p313 = pneg %p141
        %p314 = pneg %p138
        %p315 = pneg %p167
        %p316 = pneg %p164
        %s317 = sand.u32 %s154, 1
        %s318 = scalar_lea.sflag [#allocation5], %s317
        %s319 = sand.u32 %s154, 1
        %s320 = smul.addr %s319, 8
        %s321 = scalar_lea.vmem [#allocation4], %s320
        %s322 = smul.u32 6, %s21
        %s323 = ssub.s32 7, %s322
        %p324 = scmp.lt.s32.totalorder %s323, 6
        %s325 = scalar_select %p324, %s323, 6
        %s326 = smul.u32 128, %s325
        %s327 = smul.u32 %s326, 2
        %p328 = scmp.lt.s32.totalorder %s322, 6
        %s329 = scalar_select %p328, %s322, 6
        %s330 = smul.addr %s329, 2
        %s331 = smul.addr %s330, 8
        %s332 = scalar_lea.vmem %s1, %s331
        %s333 = smul.u32 6, %s21
        %s334 = ssub.s32 7, %s333
        %p335 = scmp.lt.s32.totalorder %s334, 6
        %s336 = scalar_select %p335, %s334, 6
        %s337 = smul.u32 128, %s336
        %s338 = smul.u32 %s337, 2
        %s339 = smul.u32 6, %s21
        %s340 = ssub.s32 7, %s339
        %p341 = scmp.lt.s32.totalorder %s340, 6
        %s342 = scalar_select %p341, %s340, 6
        %s343 = smul.u32 128, %s342
        %p344 = scmp.lt.s32.totalorder %s339, 6
        %s345 = scalar_select %p344, %s339, 6
        %s346 = smul.addr %s345, 8
        %s347 = scalar_lea.vmem %s2, %s346
        %s348 = smul.u32 6, %s21
        %s349 = ssub.s32 7, %s348
        %p350 = scmp.lt.s32.totalorder %s349, 6
        %s351 = scalar_select %p350, %s349, 6
        %s352 = smul.u32 128, %s351
        %s353 = smul.u32 6, %s21
        %s354 = ssub.s32 7, %s353
        %p355 = scmp.lt.s32.totalorder %s354, 6
        %s356 = scalar_select %p355, %s354, 6
        %s357 = smul.u32 128, %s356
        %p358 = scmp.lt.s32.totalorder %s353, 6
        %s359 = scalar_select %p358, %s353, 6
        %s360 = smul.addr %s359, 8
        %s361 = scalar_lea.vmem %s3, %s360
        %s362 = smul.u32 6, %s21
        %s363 = ssub.s32 7, %s362
        %p364 = scmp.lt.s32.totalorder %s363, 6
        %s365 = scalar_select %p364, %s363, 6
        %s366 = smul.u32 128, %s365
        %s367 = smul.u32 6, %s21
        %s368 = ssub.s32 7, %s367
        %p369 = scmp.lt.s32.totalorder %s368, 6
        %s370 = scalar_select %p369, %s368, 6
        %s371 = smul.u32 128, %s370
        %p372 = scmp.lt.s32.totalorder %s367, 6
        %s373 = scalar_select %p372, %s367, 6
        %s374 = smul.addr %s373, 8
        %s375 = scalar_lea.vmem %s4, %s374
        %s376 = smul.u32 6, %s21
        %s377 = ssub.s32 7, %s376
        %p378 = scmp.lt.s32.totalorder %s377, 6
        %s379 = scalar_select %p378, %s377, 6
        %s380 = smul.u32 128, %s379
        %v381 = vld [vmem:[%s332] sm:$0xff]
        %v382 = vld [vmem:[%s332 + $0x8] sm:$0xff]
        %v383 = vld [vmem:[%s332 + $0x10] sm:$0xff]
        %v384 = vld [vmem:[%s332 + $0x18] sm:$0xff]
        %v385 = vld [vmem:[%s332 + $0x20] sm:$0xff]
        %v386 = vld [vmem:[%s332 + $0x28] sm:$0xff]
        %v387 = vld [vmem:[%s332 + $0x30] sm:$0xff]
        %v388 = vld [vmem:[%s332 + $0x38] sm:$0xff]
        %v389 = vld [vmem:[%s332 + $0x40] sm:$0xff]
        %v390 = vld [vmem:[%s332 + $0x48] sm:$0xff]
        %v391 = vld [vmem:[%s332 + $0x50] sm:$0xff]
        %v392 = vld [vmem:[%s332 + $0x58] sm:$0xff]
        %v393 = vld [vmem:[%s347] sm:$0xff]
        %v394 = vld [vmem:[%s347 + $0x8] sm:$0xff]
        %v395 = vld [vmem:[%s347 + $0x10] sm:$0xff]
        %v396 = vld [vmem:[%s347 + $0x18] sm:$0xff]
        %v397 = vld [vmem:[%s347 + $0x20] sm:$0xff]
        %v398 = vld [vmem:[%s347 + $0x28] sm:$0xff]
        %v399 = vld [vmem:[%s361] sm:$0xff]
        %v400 = vld [vmem:[%s361 + $0x8] sm:$0xff]
        %v401 = vld [vmem:[%s361 + $0x10] sm:$0xff]
        %v402 = vld [vmem:[%s361 + $0x18] sm:$0xff]
        %v403 = vld [vmem:[%s361 + $0x20] sm:$0xff]
        %v404 = vld [vmem:[%s361 + $0x28] sm:$0xff]
        %v405 = vld [vmem:[%s375] sm:$0xff]
        %v406 = vld [vmem:[%s375 + $0x8] sm:$0xff]
        %v407 = vld [vmem:[%s375 + $0x10] sm:$0xff]
        %v408 = vld [vmem:[%s375 + $0x18] sm:$0xff]
        %v409 = vld [vmem:[%s375 + $0x20] sm:$0xff]
        %v410 = vld [vmem:[%s375 + $0x28] sm:$0xff]
        %v411 = vld [vmem:[%s5] sm:$0x3]
        %v412 = vlaneseq
        %v413 = vand.u32 %v412, 127
        %v414 = vadd.s32 %v413, 128
        %415 = vset.pattern.permute.xlu0 0
        %416 = vperm.xlu0 %415, %v393
        %v417 = vpop.permute.xlu0 %416
        %418 = vset.pattern.permute.xlu0 0
        %419 = vperm.xlu0 %418, %v394
        %v420 = vpop.permute.xlu0 %419
        %421 = vset.pattern.permute.xlu0 0
        %422 = vperm.xlu0 %421, %v395
        %v423 = vpop.permute.xlu0 %422
        %424 = vset.pattern.permute.xlu0 0
        %425 = vperm.xlu0 %424, %v396
        %v426 = vpop.permute.xlu0 %425
        %427 = vset.pattern.permute.xlu0 0
        %428 = vperm.xlu0 %427, %v397
        %v429 = vpop.permute.xlu0 %428
        %430 = vset.pattern.permute.xlu0 0
        %431 = vperm.xlu0 %430, %v398
        %v432 = vpop.permute.xlu0 %431
        %vm433 = vcmp.eq.s32.totalorder %v413, %v417
        %vm434 = vcmp.eq.s32.totalorder %v414, %v417
        %vm435 = vcmp.eq.s32.totalorder %v413, %v420
        %vm436 = vcmp.eq.s32.totalorder %v414, %v420
        %vm437 = vcmp.eq.s32.totalorder %v413, %v423
        %vm438 = vcmp.eq.s32.totalorder %v414, %v423
        %vm439 = vcmp.eq.s32.totalorder %v413, %v426
        %vm440 = vcmp.eq.s32.totalorder %v414, %v426
        %vm441 = vcmp.eq.s32.totalorder %v413, %v429
        %vm442 = vcmp.eq.s32.totalorder %v414, %v429
        %vm443 = vcmp.eq.s32.totalorder %v413, %v432
        %vm444 = vcmp.eq.s32.totalorder %v414, %v432
        %vm445 = vcmask 588800
        %v446 = vsel %vm445, %v382, -inf
        %v447 = vmax.f32 %v381, %v446
        %448 = vmax.xlane.f32.xlu0 %v447
        %v449 = vpop.xlane.xlu0 %448
        %v450 = vsel %vm445, %v384, -inf
        %v451 = vmax.f32 %v383, %v450
        %452 = vmax.xlane.f32.xlu0 %v451
        %v453 = vpop.xlane.xlu0 %452
        %v454 = vsel %vm445, %v386, -inf
        %v455 = vmax.f32 %v385, %v454
        %456 = vmax.xlane.f32.xlu0 %v455
        %v457 = vpop.xlane.xlu0 %456
        %v458 = vsel %vm445, %v388, -inf
        %v459 = vmax.f32 %v387, %v458
        %460 = vmax.xlane.f32.xlu0 %v459
        %v461 = vpop.xlane.xlu0 %460
        %v462 = vsel %vm445, %v390, -inf
        %v463 = vmax.f32 %v389, %v462
        %464 = vmax.xlane.f32.xlu0 %v463
        %v465 = vpop.xlane.xlu0 %464
        %v466 = vsel %vm445, %v392, -inf
        %v467 = vmax.f32 %v391, %v466
        %468 = vmax.xlane.f32.xlu0 %v467
        %v469 = vpop.xlane.xlu0 %468
        %v470 = vsub.f32 %v381, %v449
        %v471 = vsub.f32 %v382, %v449
        %v472 = vsub.f32 %v383, %v453
        %v473 = vsub.f32 %v384, %v453
        %v474 = vsub.f32 %v385, %v457
        %v475 = vsub.f32 %v386, %v457
        %v476 = vsub.f32 %v387, %v461
        %v477 = vsub.f32 %v388, %v461
        %v478 = vsub.f32 %v389, %v465
        %v479 = vsub.f32 %v390, %v465
        %v480 = vsub.f32 %v391, %v469
        %v481 = vsub.f32 %v392, %v469
        %v482 = vmul.f32 %v470, 1.442695
        %v483 = vpow.pop %v482
        %v484 = vmul.f32 %v471, 1.442695
        %v485 = vpow.pop %v484
        %v486 = vmul.f32 %v472, 1.442695
        %v487 = vpow.pop %v486
        %v488 = vmul.f32 %v473, 1.442695
        %v489 = vpow.pop %v488
        %v490 = vmul.f32 %v474, 1.442695
        %v491 = vpow.pop %v490
        %v492 = vmul.f32 %v475, 1.442695
        %v493 = vpow.pop %v492
        %v494 = vmul.f32 %v476, 1.442695
        %v495 = vpow.pop %v494
        %v496 = vmul.f32 %v477, 1.442695
        %v497 = vpow.pop %v496
        %v498 = vmul.f32 %v478, 1.442695
        %v499 = vpow.pop %v498
        %v500 = vmul.f32 %v479, 1.442695
        %v501 = vpow.pop %v500
        %v502 = vmul.f32 %v480, 1.442695
        %v503 = vpow.pop %v502
        %v504 = vmul.f32 %v481, 1.442695
        %v505 = vpow.pop %v504
        %v506 = vsel %vm445, %v485, 0.0
        %v507 = vadd.f32 %v483, %v506
        %508 = vadd.xlane.f32.xlu0 %v507
        %v509 = vpop.xlane.xlu0 %508
        %v510 = vsel %vm445, %v489, 0.0
        %v511 = vadd.f32 %v487, %v510
        %512 = vadd.xlane.f32.xlu0 %v511
        %v513 = vpop.xlane.xlu0 %512
        %v514 = vsel %vm445, %v493, 0.0
        %v515 = vadd.f32 %v491, %v514
        %516 = vadd.xlane.f32.xlu0 %v515
        %v517 = vpop.xlane.xlu0 %516
        %v518 = vsel %vm445, %v497, 0.0
        %v519 = vadd.f32 %v495, %v518
        %520 = vadd.xlane.f32.xlu0 %v519
        %v521 = vpop.xlane.xlu0 %520
        %v522 = vsel %vm445, %v501, 0.0
        %v523 = vadd.f32 %v499, %v522
        %524 = vadd.xlane.f32.xlu0 %v523
        %v525 = vpop.xlane.xlu0 %524
        %v526 = vsel %vm445, %v505, 0.0
        %v527 = vadd.f32 %v503, %v526
        %528 = vadd.xlane.f32.xlu0 %v527
        %v529 = vpop.xlane.xlu0 %528
        %v530 = vlog2.pop %v509
        %v531 = vmul.f32 %v530, 0.6931472
        %v532 = vlog2.pop %v513
        %v533 = vmul.f32 %v532, 0.6931472
        %v534 = vlog2.pop %v517
        %v535 = vmul.f32 %v534, 0.6931472
        %v536 = vlog2.pop %v521
        %v537 = vmul.f32 %v536, 0.6931472
        %v538 = vlog2.pop %v525
        %v539 = vmul.f32 %v538, 0.6931472
        %v540 = vlog2.pop %v529
        %v541 = vmul.f32 %v540, 0.6931472
        %v542 = vsub.f32 %v470, %v531
        %v543 = vsub.f32 %v471, %v531
        %v544 = vsub.f32 %v472, %v533
        %v545 = vsub.f32 %v473, %v533
        %v546 = vsub.f32 %v474, %v535
        %v547 = vsub.f32 %v475, %v535
        %v548 = vsub.f32 %v476, %v537
        %v549 = vsub.f32 %v477, %v537
        %v550 = vsub.f32 %v478, %v539
        %v551 = vsub.f32 %v479, %v539
        %v552 = vsub.f32 %v480, %v541
        %v553 = vsub.f32 %v481, %v541
        %v554 = vsub.f32 %v399, %v449
        %v555 = vsub.f32 %v400, %v453
        %v556 = vsub.f32 %v401, %v457
        %v557 = vsub.f32 %v402, %v461
        %v558 = vsub.f32 %v403, %v465
        %v559 = vsub.f32 %v404, %v469
        %v560 = vsub.f32 %v554, %v531
        %v561 = vsub.f32 %v555, %v533
        %v562 = vsub.f32 %v556, %v535
        %v563 = vsub.f32 %v557, %v537
        %v564 = vsub.f32 %v558, %v539
        %v565 = vsub.f32 %v559, %v541
        %v566 = vmax.f32 %v560, -4.6051702
        %v567 = vmax.f32 %v561, -4.6051702
        %v568 = vmax.f32 %v562, -4.6051702
        %v569 = vmax.f32 %v563, -4.6051702
        %v570 = vmax.f32 %v564, -4.6051702
        %v571 = vmax.f32 %v565, -4.6051702
        %v573 = vlaneseq
        %v574 = vshrl.u32 %v573, 7
        %v575 = vsub.s32 0, %v574
        %v576 = vrot.slane %v411, %v575
        %v577 = vlaneseq
        %v578 = vshrl.u32 %v577, 7
        %v579 = vsub.s32 1, %v578
        %v580 = vrot.slane %v411, %v579
        %584 = vset.pattern.permute.xlu0 0
        %585 = vperm.xlu0 %584, %v405
        %v586 = vpop.permute.xlu0 %585
        %589 = vset.pattern.permute.xlu0 0
        %590 = vperm.xlu0 %589, %v406
        %v591 = vpop.permute.xlu0 %590
        %594 = vset.pattern.permute.xlu0 0
        %595 = vperm.xlu0 %594, %v407
        %v596 = vpop.permute.xlu0 %595
        %599 = vset.pattern.permute.xlu0 0
        %600 = vperm.xlu0 %599, %v408
        %v601 = vpop.permute.xlu0 %600
        %604 = vset.pattern.permute.xlu0 0
        %605 = vperm.xlu0 %604, %v409
        %v606 = vpop.permute.xlu0 %605
        %609 = vset.pattern.permute.xlu0 0
        %610 = vperm.xlu0 %609, %v410
        %v611 = vpop.permute.xlu0 %610
        %v613 = vsub.f32 %v576, %v586
        %v614 = vsub.f32 %v580, %v586
        %v615 = vsub.f32 %v576, %v591
        %v616 = vsub.f32 %v580, %v591
        %v617 = vsub.f32 %v576, %v596
        %v618 = vsub.f32 %v580, %v596
        %v619 = vsub.f32 %v576, %v601
        %v620 = vsub.f32 %v580, %v601
        %v621 = vsub.f32 %v576, %v606
        %v622 = vsub.f32 %v580, %v606
        %v623 = vsub.f32 %v576, %v611
        %v624 = vsub.f32 %v580, %v611
        %v625 = vmin.f32 %v613, 0.0
        %v626 = vmin.f32 %v614, 0.0
        %v627 = vmin.f32 %v615, 0.0
        %v628 = vmin.f32 %v616, 0.0
        %v629 = vmin.f32 %v617, 0.0
        %v630 = vmin.f32 %v618, 0.0
        %v631 = vmin.f32 %v619, 0.0
        %v632 = vmin.f32 %v620, 0.0
        %v633 = vmin.f32 %v621, 0.0
        %v634 = vmin.f32 %v622, 0.0
        %v635 = vmin.f32 %v623, 0.0
        %v636 = vmin.f32 %v624, 0.0
        %v637 = vmul.f32 %v625, 0.8
        %v638 = vmul.f32 %v626, 0.8
        %v639 = vmul.f32 %v627, 0.8
        %v640 = vmul.f32 %v628, 0.8
        %v641 = vmul.f32 %v629, 0.8
        %v642 = vmul.f32 %v630, 0.8
        %v643 = vmul.f32 %v631, 0.8
        %v644 = vmul.f32 %v632, 0.8
        %v645 = vmul.f32 %v633, 0.8
        %v646 = vmul.f32 %v634, 0.8
        %v647 = vmul.f32 %v635, 0.8
        %v648 = vmul.f32 %v636, 0.8
        %650 = vset.pattern.permute.xlu0 0
        %651 = vperm.xlu0 %650, %v566
        %v652 = vpop.permute.xlu0 %651
        %655 = vset.pattern.permute.xlu0 0
        %656 = vperm.xlu0 %655, %v567
        %v657 = vpop.permute.xlu0 %656
        %660 = vset.pattern.permute.xlu0 0
        %661 = vperm.xlu0 %660, %v568
        %v662 = vpop.permute.xlu0 %661
        %665 = vset.pattern.permute.xlu0 0
        %666 = vperm.xlu0 %665, %v569
        %v667 = vpop.permute.xlu0 %666
        %670 = vset.pattern.permute.xlu0 0
        %671 = vperm.xlu0 %670, %v570
        %v672 = vpop.permute.xlu0 %671
        %675 = vset.pattern.permute.xlu0 0
        %676 = vperm.xlu0 %675, %v571
        %v677 = vpop.permute.xlu0 %676
        %v679 = vsub.f32 %v542, %v652
        %v680 = vsub.f32 %v543, %v652
        %v681 = vsub.f32 %v544, %v657
        %v682 = vsub.f32 %v545, %v657
        %v683 = vsub.f32 %v546, %v662
        %v684 = vsub.f32 %v547, %v662
        %v685 = vsub.f32 %v548, %v667
        %v686 = vsub.f32 %v549, %v667
        %v687 = vsub.f32 %v550, %v672
        %v688 = vsub.f32 %v551, %v672
        %v689 = vsub.f32 %v552, %v677
        %v690 = vsub.f32 %v553, %v677
        %v691 = vmax.f32 %v679, 0.0
        %v692 = vmax.f32 %v680, 0.0
        %v693 = vmax.f32 %v681, 0.0
        %v694 = vmax.f32 %v682, 0.0
        %v695 = vmax.f32 %v683, 0.0
        %v696 = vmax.f32 %v684, 0.0
        %v697 = vmax.f32 %v685, 0.0
        %v698 = vmax.f32 %v686, 0.0
        %v699 = vmax.f32 %v687, 0.0
        %v700 = vmax.f32 %v688, 0.0
        %v701 = vmax.f32 %v689, 0.0
        %v702 = vmax.f32 %v690, 0.0
        %v703 = vmul.f32 %v691, 2.0
        %v704 = vmul.f32 %v692, 2.0
        %v705 = vmul.f32 %v693, 2.0
        %v706 = vmul.f32 %v694, 2.0
        %v707 = vmul.f32 %v695, 2.0
        %v708 = vmul.f32 %v696, 2.0
        %v709 = vmul.f32 %v697, 2.0
        %v710 = vmul.f32 %v698, 2.0
        %v711 = vmul.f32 %v699, 2.0
        %v712 = vmul.f32 %v700, 2.0
        %v713 = vmul.f32 %v701, 2.0
        %v714 = vmul.f32 %v702, 2.0
        %v715 = vadd.f32 %v637, %v703
        %v716 = vadd.f32 %v638, %v704
        %v717 = vadd.f32 %v639, %v705
        %v718 = vadd.f32 %v640, %v706
        %v719 = vadd.f32 %v641, %v707
        %v720 = vadd.f32 %v642, %v708
        %v721 = vadd.f32 %v643, %v709
        %v722 = vadd.f32 %v644, %v710
        %v723 = vadd.f32 %v645, %v711
        %v724 = vadd.f32 %v646, %v712
        %v725 = vadd.f32 %v647, %v713
        %v726 = vadd.f32 %v648, %v714
        %v727 = vsel %vm433, 0.0, %v715
        %v728 = vsel %vm434, 0.0, %v716
        %v729 = vsel %vm435, 0.0, %v717
        %v730 = vsel %vm436, 0.0, %v718
        %v731 = vsel %vm437, 0.0, %v719
        %v732 = vsel %vm438, 0.0, %v720
        %v733 = vsel %vm439, 0.0, %v721
        %v734 = vsel %vm440, 0.0, %v722
        %v735 = vsel %vm441, 0.0, %v723
        %v736 = vsel %vm442, 0.0, %v724
        %v737 = vsel %vm443, 0.0, %v725
        %v738 = vsel %vm444, 0.0, %v726
        %v739 = vadd.f32 %v470, %v727
        %v740 = vadd.f32 %v471, %v728
        %v741 = vadd.f32 %v472, %v729
        %v742 = vadd.f32 %v473, %v730
        %v743 = vadd.f32 %v474, %v731
        %v744 = vadd.f32 %v475, %v732
        %v745 = vadd.f32 %v476, %v733
        %v746 = vadd.f32 %v477, %v734
        %v747 = vadd.f32 %v478, %v735
        %v748 = vadd.f32 %v479, %v736
        %v749 = vadd.f32 %v480, %v737
        %v750 = vadd.f32 %v481, %v738
        %v751 = vmul.f32 %v739, 1.442695
        %v752 = vpow.pop %v751
        %v753 = vmul.f32 %v740, 1.442695
        %v754 = vpow.pop %v753
        %v755 = vmul.f32 %v741, 1.442695
        %v756 = vpow.pop %v755
        %v757 = vmul.f32 %v742, 1.442695
        %v758 = vpow.pop %v757
        %v759 = vmul.f32 %v743, 1.442695
        %v760 = vpow.pop %v759
        %v761 = vmul.f32 %v744, 1.442695
        %v762 = vpow.pop %v761
        %v763 = vmul.f32 %v745, 1.442695
        %v764 = vpow.pop %v763
        %v765 = vmul.f32 %v746, 1.442695
        %v766 = vpow.pop %v765
        %v767 = vmul.f32 %v747, 1.442695
        %v768 = vpow.pop %v767
        %v769 = vmul.f32 %v748, 1.442695
        %v770 = vpow.pop %v769
        %v771 = vmul.f32 %v749, 1.442695
        %v772 = vpow.pop %v771
        %v773 = vmul.f32 %v750, 1.442695
        %v774 = vpow.pop %v773
        %v775 = vsel %vm445, %v754, 0.0
        %v776 = vadd.f32 %v752, %v775
        %777 = vadd.xlane.f32.xlu0 %v776
        %v778 = vpop.xlane.xlu0 %777
        %v779 = vsel %vm445, %v758, 0.0
        %v780 = vadd.f32 %v756, %v779
        %781 = vadd.xlane.f32.xlu0 %v780
        %v782 = vpop.xlane.xlu0 %781
        %v783 = vsel %vm445, %v762, 0.0
        %v784 = vadd.f32 %v760, %v783
        %785 = vadd.xlane.f32.xlu0 %v784
        %v786 = vpop.xlane.xlu0 %785
        %v787 = vsel %vm445, %v766, 0.0
        %v788 = vadd.f32 %v764, %v787
        %789 = vadd.xlane.f32.xlu0 %v788
        %v790 = vpop.xlane.xlu0 %789
        %v791 = vsel %vm445, %v770, 0.0
        %v792 = vadd.f32 %v768, %v791
        %793 = vadd.xlane.f32.xlu0 %v792
        %v794 = vpop.xlane.xlu0 %793
        %v795 = vsel %vm445, %v774, 0.0
        %v796 = vadd.f32 %v772, %v795
        %797 = vadd.xlane.f32.xlu0 %v796
        %v798 = vpop.xlane.xlu0 %797
        %v799 = vlog2.pop %v778
        %v800 = vmul.f32 %v799, 0.6931472
        %v801 = vlog2.pop %v782
        %v802 = vmul.f32 %v801, 0.6931472
        %v803 = vlog2.pop %v786
        %v804 = vmul.f32 %v803, 0.6931472
        %v805 = vlog2.pop %v790
        %v806 = vmul.f32 %v805, 0.6931472
        %v807 = vlog2.pop %v794
        %v808 = vmul.f32 %v807, 0.6931472
        %v809 = vlog2.pop %v798
        %v810 = vmul.f32 %v809, 0.6931472
        %v811 = vadd.f32 %v449, %v800
        %v812 = vadd.f32 %v453, %v802
        %v813 = vadd.f32 %v457, %v804
        %v814 = vadd.f32 %v461, %v806
        %v815 = vadd.f32 %v465, %v808
        %v816 = vadd.f32 %v469, %v810
        %v817 = vsub.f32 %v811, %v399
        %v818 = vsub.f32 %v812, %v400
        %v819 = vsub.f32 %v813, %v401
        %v820 = vsub.f32 %v814, %v402
        %v821 = vsub.f32 %v815, %v403
        %v822 = vsub.f32 %v816, %v404
        %s823 = smul.u32 %s21, 48
        %v824 = vlaneseq
        %v825 = vshrl.u32 %v824, 7
        %v826 = vadd.s32 %v825, 8
        %v827 = vadd.s32 %v825, 16
        %v828 = vadd.s32 %v825, 24
        %v829 = vadd.s32 %v825, 32
        %v830 = vadd.s32 %v825, 40
        %v831 = vstv %s823
        %v832 = vadd.s32 %v831, %v825
        %v833 = vadd.s32 %v831, %v826
        %v834 = vadd.s32 %v831, %v827
        %v835 = vadd.s32 %v831, %v828
        %v836 = vadd.s32 %v831, %v829
        %v837 = vadd.s32 %v831, %v830
        %s838 = sld [smem:[#allocation3]]
        %v839 = vstv %s838
        %vm840 = vcmp.lt.s32.totalorder %v832, %v839
        %vm841 = vcmp.lt.s32.totalorder %v833, %v839
        %vm842 = vcmp.lt.s32.totalorder %v834, %v839
        %vm843 = vcmp.lt.s32.totalorder %v835, %v839
        %vm844 = vcmp.lt.s32.totalorder %v836, %v839
        %vm845 = vcmp.lt.s32.totalorder %v837, %v839
        %v846 = vsel %vm840, %v817, 0.0
        %v847 = vsel %vm841, %v818, 0.0
        %v848 = vsel %vm842, %v819, 0.0
        %v849 = vsel %vm843, %v820, 0.0
        %v850 = vsel %vm844, %v821, 0.0
        %v851 = vsel %vm845, %v822, 0.0
        %vm852 = vcmask 7168
        %v853 = vsel %vm852, %v846, 0.0
        %v854 = vsel %vm852, %v847, 0.0
        %v855 = vadd.f32 %v853, %v854
        %v856 = vsel %vm852, %v848, 0.0
        %v857 = vadd.f32 %v855, %v856
        %v858 = vsel %vm852, %v849, 0.0
        %v859 = vadd.f32 %v857, %v858
        %v860 = vsel %vm852, %v850, 0.0
        %v861 = vadd.f32 %v859, %v860
        %v862 = vsel %vm852, %v851, 0.0
        %v863 = vadd.f32 %v861, %v862
        %864 = vadd.xlane.f32.xlu0 %v863
        %v865 = vpop.xlane.xlu0 %864
        %v866 = vrot.slane %v865, 4
        %v867 = vadd.f32 %v865, %v866
        %v868 = vrot.slane %v867, 2
        %v869 = vadd.f32 %v867, %v868
        %v870 = vrot.slane %v869, 1
        %v871 = vadd.f32 %v869, %v870
        %s872 = vtos %v871
        %v873 = vstv %s872
        %874 = vst [vmem:[%s321] sm:$0xff] %v873
        %s875 = sand.u32 %s154, 1
        %s876 = scalar_lea.sflag [#allocation5], %s875
        %s877 = sand.u32 %s154, 1
        %s878 = smul.addr %s877, 8
        %s879 = scalar_lea.vmem [#allocation4], %s878
        // Predicated region
        $region41: #{tpu_custom_call.1} parent=39 // pred_check
          %p880 = pneg %p164
        $region42: #{tpu_custom_call.1} parent=39 // pred_check_branch
          %882 = sbr.rel (%p880) target = $region44
        $region43: #{tpu_custom_call.1} parent=39 // pred_region
          %s884 = ssub.s32 128, 128
          %885 = vsyncadd %s876, %s884
          %s886 = smul.addr %s21, 128
          %s887 = scalar_lea.hbm %s6, %s886
          %s889 = sshll.u32 %s879, 4
          %s890 = int_to_ptr.vmem [resolvable:$true] %s889
          %892 = dma.vmem_to_hbm [thread:$0]  %s890, 128, %s887, %s876
        $region44: #{tpu_custom_call.1} parent=39 // pred_fallthru
          _
      $region40: #{tpu_custom_call.1} parent=5 // pred_fallthru
        _
      %p893 = scmp.le.s32.totalorder 2, %s16
      // Predicated region
      $region45: #{tpu_custom_call.1} parent=5 // pred_check
        %p894 = pneg %p893
      $region46: #{tpu_custom_call.1} parent=5 // pred_check_branch
        %896 = sbr.rel (%p894) target = $region48
      $region47: #{tpu_custom_call.1} parent=5 // pred_region
        %s897 = ssub.s32 %s16, 2
        // Predicated region
        $region49: #{tpu_custom_call.1} parent=47 // pred_check
          %p898 = pneg %p170
        $region50: #{tpu_custom_call.1} parent=47 // pred_check_branch
          %900 = sbr.rel (%p898) target = $region52
        $region51: #{tpu_custom_call.1} parent=47 // pred_region
          %s901 = sand.u32 %s155, 1
          %s902 = scalar_lea.sflag [#allocation5], %s901
          %s903 = sand.u32 %s155, 1
          %s904 = smul.addr %s903, 8
          %s905 = scalar_lea.vmem [#allocation4], %s904
          %906 = dma.done %s902, 128
        $region52: #{tpu_custom_call.1} parent=47 // pred_fallthru
          _
      $region48: #{tpu_custom_call.1} parent=5 // pred_fallthru
        _
    $region6: #{tpu_custom_call.1} parent=1 // loop_footer
      %s20 = sadd.s32 1, %s16
    $region7: #{tpu_custom_call.1} parent=1 // loop_footer_branch
      %15 = sbr.rel target = $region3
    $region8: #{tpu_custom_call.1} parent=1 // loop_exit
      _
    %907 = vsyncpa [#allocation5], 1
    %s908 = scalar_lea.sflag [#allocation5], 1
    %909 = vsyncpa %s908, 1

</llo_original>
